<compile_context>
chip_gen: v7x
topology: tpu7x:2x2x1
jax: 0.10.0
libtpu: 0.0.40
codegen_flags: <defaults>
</compile_context>

<pallas_src>
import jax
import jax.numpy as jnp
from jax.experimental import pallas as pl
from jax.experimental.pallas import tpu as pltpu

LANE = 128  # final output slab is lane-padded to 128 for unmasked full-lane stores


# ----------------------------- Pallas kernel --------------------------------
def fused_gnn_kernel(adj_ref, invdeg_ref, x_ref,
                     w1l_ref, w1r_ref, b1_ref,
                     w2l_ref, w2r_ref, b2_ref, out_ref):
    """Both SAGEConv layers fused; everything resident in VMEM.

    adj    : [N, N]     bf16  exact in-degree counts (row i = edges j->i)
    invdeg : [N, 1]     f32   1 / max(in-degree, 1)
    x      : [N, F]     bf16  node features (unpadded, F=16)
    w1l/w1r: [F, H]     bf16  layer-1 lin_l.T / lin_r.T   (H=32, unpadded)
    b1     : [1, H]     f32
    w2l/w2r: [H, 128]   bf16  layer-2 lin_l.T / lin_r.T, output lane-padded
    b2     : [1, 128]   f32   output lane-padded
    out    : [N, 128]   f32   lane-dense slab (valid cols sliced outside)
    """
    adj = adj_ref[...]
    inv_deg = invdeg_ref[...]
    x = x_ref[...]

    # ---- layer 1: mean aggregation (MXU + f32 row scale) + two summed dots
    agg1 = jnp.dot(adj, x, preferred_element_type=jnp.float32) * inv_deg      # [N, F]
    h = (jnp.dot(agg1.astype(jnp.bfloat16), w1l_ref[...],
                 preferred_element_type=jnp.float32)
         + jnp.dot(x, w1r_ref[...], preferred_element_type=jnp.float32)
         + b1_ref[...])
    h = jnp.maximum(h, 0.0)                                                   # relu, f32 [N, H]

    # ---- layer 2: same structure, no relu
    h_b = h.astype(jnp.bfloat16)
    agg2 = jnp.dot(adj, h_b, preferred_element_type=jnp.float32) * inv_deg    # [N, H]
    out_ref[...] = (jnp.dot(agg2.astype(jnp.bfloat16), w2l_ref[...],
                            preferred_element_type=jnp.float32)
                    + jnp.dot(h_b, w2r_ref[...],
                              preferred_element_type=jnp.float32)
                    + b2_ref[...])                                            # [N, 128] f32


@jax.jit
def fused_gnn(adj_b, inv_deg, x_b, w1l, w1r, b1, w2l, w2r, b2):
    n, f_in = x_b.shape
    hid = w1l.shape[1]
    out_w = w2l.shape[1]

    flops = (2 * n * n * f_in            # adj @ x
             + 2 * 2 * n * f_in * hid    # layer-1 lin_l + lin_r
             + 2 * n * n * hid           # adj @ h
             + 2 * 2 * n * hid * out_w)  # layer-2 lin_l + lin_r
    in_arrays = (adj_b, inv_deg, x_b, w1l, w1r, b1, w2l, w2r, b2)
    bytes_accessed = sum(a.size * a.dtype.itemsize for a in in_arrays) + n * out_w * 4

    vmem = pl.BlockSpec(memory_space=pltpu.MemorySpace.VMEM)
    return pl.pallas_call(
        fused_gnn_kernel,
        out_shape=jax.ShapeDtypeStruct((n, out_w), jnp.float32),
        in_specs=[vmem] * 9,
        out_specs=vmem,
        cost_estimate=pl.CostEstimate(flops=flops, transcendentals=0,
                                      bytes_accessed=bytes_accessed),
        compiler_params=pltpu.CompilerParams(vmem_limit_bytes=32 * 1024 * 1024),
    )(adj_b, inv_deg, x_b, w1l, w1r, b1, w2l, w2r, b2)


# --------------------------- hoisted preprocessing ---------------------------
def build_count_adjacency(edge_index, num_nodes):
    """Dense in-edge count matrix A[i, j] = #edges j->i, plus f32 1/deg scale.

    NOTE: duplicate edges are counted with multiplicity (matches PyG
    scatter-mean semantics) -- intentional, do not 'fix'.
    Counts are small integers, exact in bf16; the mean normalization is applied
    post-matmul in f32 via inv_deg to avoid bf16-rounding 1/deg.
    """
    src, dst = edge_index[0], edge_index[1]
    a = jnp.zeros((num_nodes, num_nodes), jnp.float32)
    a = a.at[dst, src].add(1.0)
    deg = a.sum(axis=1, keepdims=True)
    inv_deg = 1.0 / jnp.maximum(deg, 1.0)                      # f32 [N, 1]
    return a.astype(jnp.bfloat16), inv_deg


def prep_layer_weights(wl, wr, b, out_pad=None):
    """Transpose to [F_in, F_out] bf16; optionally lane-pad the OUTPUT dim only."""
    f_out, f_in = wl.shape
    tgt = f_out if out_pad is None else out_pad
    wl_t = jnp.zeros((f_in, tgt), jnp.float32).at[:, :f_out].set(wl.T)
    wr_t = jnp.zeros((f_in, tgt), jnp.float32).at[:, :f_out].set(wr.T)
    b_p = jnp.zeros((1, tgt), jnp.float32).at[0, :f_out].set(b)
    return wl_t.astype(jnp.bfloat16), wr_t.astype(jnp.bfloat16), b_p


def init_linear(key, f_in, f_out, bias):
    """Deterministic Kaiming-uniform-ish init matching torch.nn.Linear shapes."""
    k_w, k_b = jax.random.split(key)
    bound = 1.0 / jnp.sqrt(jnp.float32(f_in))
    w = jax.random.uniform(k_w, (f_out, f_in), jnp.float32, -bound, bound)
    b = (jax.random.uniform(k_b, (f_out,), jnp.float32, -bound, bound)
         if bias else None)
    return w, b


# -------------------------------- main ---------------------------------------
if __name__ == "__main__":
    N = 64            # number of nodes
    F_IN = 16         # input feature dim
    HIDDEN = 32       # hidden_channels
    OUT = 8           # out_channels
    E = 256           # number of edges

    key = jax.random.PRNGKey(0)
    k_x, k_e, k1, k2, k3, k4 = jax.random.split(key, 6)

    x = jax.random.normal(k_x, (N, F_IN), jnp.float32)
    edge_index = jax.random.randint(k_e, (2, E), 0, N, jnp.int32)

    (w1l_t, b1l) = init_linear(k1, F_IN, HIDDEN, bias=True)    # conv1.lin_l
    (w1r_t, _) = init_linear(k2, F_IN, HIDDEN, bias=False)     # conv1.lin_r
    (w2l_t, b2l) = init_linear(k3, HIDDEN, OUT, bias=True)     # conv2.lin_l
    (w2r_t, _) = init_linear(k4, HIDDEN, OUT, bias=False)      # conv2.lin_r

    # ---- hoisted, once-per-graph / once-per-params preprocessing ----
    adj_b, inv_deg = build_count_adjacency(edge_index, N)      # bf16 [N,N], f32 [N,1]
    x_b = x.astype(jnp.bfloat16)                               # bf16 [N, 16] (no K padding)
    w1l, w1r, b1 = prep_layer_weights(w1l_t, w1r_t, b1l)       # bf16 [16,32], f32 [1,32]
    w2l, w2r, b2 = prep_layer_weights(w2l_t, w2r_t, b2l, out_pad=LANE)  # bf16 [32,128], f32 [1,128]

    # ---- fused forward: one Pallas kernel launch ----
    out_pad = jax.block_until_ready(
        fused_gnn(adj_b, inv_deg, x_b, w1l, w1r, b1, w2l, w2r, b2))
    out = out_pad[:, :OUT]
    assert out.shape == (N, OUT), out.shape

    # ---- reference 1: mirrors the kernel's bf16 casts exactly (tight check) ----
    f32 = lambda a: a.astype(jnp.float32)
    adj_f, x_f = f32(adj_b), f32(x_b)
    agg1 = (adj_f @ x_f) * inv_deg
    h_ref = jnp.maximum(
        f32(agg1.astype(jnp.bfloat16)) @ f32(w1l) + x_f @ f32(w1r) + b1, 0.0)
    h_bf = f32(h_ref.astype(jnp.bfloat16))
    agg2 = (adj_f @ h_bf) * inv_deg
    ref_pad = f32(agg2.astype(jnp.bfloat16)) @ f32(w2l) + h_bf @ f32(w2r) + b2
    assert jnp.allclose(out_pad, ref_pad, atol=2e-3, rtol=2e-3), "kernel != bf16 ref"

    # ---- reference 2: pure-f32 PyG SAGEConv semantics (loose, bf16 rounding) ----
    a_f32 = jnp.zeros((N, N), jnp.float32).at[edge_index[1], edge_index[0]].add(1.0)
    a_mean = a_f32 / jnp.maximum(a_f32.sum(axis=1, keepdims=True), 1.0)
    h_f32 = jnp.maximum(a_mean @ x @ w1l_t.T + b1l + x @ w1r_t.T, 0.0)
    o_f32 = a_mean @ h_f32 @ w2l_t.T + b2l + h_f32 @ w2r_t.T
    assert jnp.allclose(out, o_f32, atol=5e-2, rtol=5e-2), "kernel != f32 semantics"

    # padded output lanes must be exactly zero (zero weight cols / zero bias)
    assert jnp.all(out_pad[:, OUT:] == 0.0)

    print("KERNEL_OK")
</pallas_src>

<mosaic_0001>
module attributes {stable_mosaic.version = 11 : i64} {
  func.func @fused_gnn_kernel(%arg0: memref<64x64xbf16, #tpu.memory_space<vmem>>, %arg1: memref<64x1xf32, #tpu.memory_space<vmem>>, %arg2: memref<64x16xbf16, #tpu.memory_space<vmem>>, %arg3: memref<16x32xbf16, #tpu.memory_space<vmem>>, %arg4: memref<16x32xbf16, #tpu.memory_space<vmem>>, %arg5: memref<1x32xf32, #tpu.memory_space<vmem>>, %arg6: memref<32x128xbf16, #tpu.memory_space<vmem>>, %arg7: memref<32x128xbf16, #tpu.memory_space<vmem>>, %arg8: memref<1x128xf32, #tpu.memory_space<vmem>>, %arg9: memref<64x128xf32, #tpu.memory_space<vmem>>) attributes {dimension_semantics = [], scalar_prefetch = 0 : i64, scratch_operands = 0 : i64, tpu.core_type = #tpu.core_type<tc>} {
    %c0 = arith.constant 0 : index
    %c0_0 = arith.constant 0 : index
    %0 = vector.load %arg0[%c0, %c0_0] : memref<64x64xbf16, #tpu.memory_space<vmem>>, vector<64x64xbf16>
    %c0_1 = arith.constant 0 : index
    %c0_2 = arith.constant 0 : index
    %1 = vector.load %arg1[%c0_1, %c0_2] : memref<64x1xf32, #tpu.memory_space<vmem>>, vector<64x1xf32>
    %c0_3 = arith.constant 0 : index
    %c0_4 = arith.constant 0 : index
    %2 = vector.load %arg2[%c0_3, %c0_4] : memref<64x16xbf16, #tpu.memory_space<vmem>>, vector<64x16xbf16>
    %cst = arith.constant dense<0.000000e+00> : vector<64x16xf32>
    %3 = tpu.matmul %0, %2, %cst {dimension_numbers = #tpu.dot_dimension_numbers<[1], [0], [0], [1], [0, 0, 1, 1], [], []>} : vector<64x64xbf16>, vector<64x16xbf16>, vector<64x16xf32> -> vector<64x16xf32>
    %4 = vector.broadcast %1 : vector<64x1xf32> to vector<64x16xf32>
    %5 = arith.mulf %3, %4 : vector<64x16xf32>
    %6 = arith.truncf %5 : vector<64x16xf32> to vector<64x16xbf16>
    %c0_5 = arith.constant 0 : index
    %c0_6 = arith.constant 0 : index
    %7 = vector.load %arg3[%c0_5, %c0_6] : memref<16x32xbf16, #tpu.memory_space<vmem>>, vector<16x32xbf16>
    %cst_7 = arith.constant dense<0.000000e+00> : vector<64x32xf32>
    %8 = tpu.matmul %6, %7, %cst_7 {dimension_numbers = #tpu.dot_dimension_numbers<[1], [0], [0], [1], [0, 0, 1, 1], [], []>} : vector<64x16xbf16>, vector<16x32xbf16>, vector<64x32xf32> -> vector<64x32xf32>
    %c0_8 = arith.constant 0 : index
    %c0_9 = arith.constant 0 : index
    %9 = vector.load %arg4[%c0_8, %c0_9] : memref<16x32xbf16, #tpu.memory_space<vmem>>, vector<16x32xbf16>
    %cst_10 = arith.constant dense<0.000000e+00> : vector<64x32xf32>
    %10 = tpu.matmul %2, %9, %cst_10 {dimension_numbers = #tpu.dot_dimension_numbers<[1], [0], [0], [1], [0, 0, 1, 1], [], []>} : vector<64x16xbf16>, vector<16x32xbf16>, vector<64x32xf32> -> vector<64x32xf32>
    %11 = arith.addf %8, %10 : vector<64x32xf32>
    %c0_11 = arith.constant 0 : index
    %c0_12 = arith.constant 0 : index
    %12 = vector.load %arg5[%c0_11, %c0_12] : memref<1x32xf32, #tpu.memory_space<vmem>>, vector<1x32xf32>
    %13 = vector.broadcast %12 : vector<1x32xf32> to vector<64x32xf32>
    %14 = arith.addf %11, %13 : vector<64x32xf32>
    %cst_13 = arith.constant 0.000000e+00 : f32
    %15 = vector.broadcast %cst_13 : f32 to vector<64x32xf32>
    %16 = arith.maximumf %14, %15 : vector<64x32xf32>
    %17 = arith.truncf %16 : vector<64x32xf32> to vector<64x32xbf16>
    %cst_14 = arith.constant dense<0.000000e+00> : vector<64x32xf32>
    %18 = tpu.matmul %0, %17, %cst_14 {dimension_numbers = #tpu.dot_dimension_numbers<[1], [0], [0], [1], [0, 0, 1, 1], [], []>} : vector<64x64xbf16>, vector<64x32xbf16>, vector<64x32xf32> -> vector<64x32xf32>
    %19 = vector.broadcast %1 : vector<64x1xf32> to vector<64x32xf32>
    %20 = arith.mulf %18, %19 : vector<64x32xf32>
    %21 = arith.truncf %20 : vector<64x32xf32> to vector<64x32xbf16>
    %c0_15 = arith.constant 0 : index
    %c0_16 = arith.constant 0 : index
    %22 = vector.load %arg6[%c0_15, %c0_16] : memref<32x128xbf16, #tpu.memory_space<vmem>>, vector<32x128xbf16>
    %cst_17 = arith.constant dense<0.000000e+00> : vector<64x128xf32>
    %23 = tpu.matmul %21, %22, %cst_17 {dimension_numbers = #tpu.dot_dimension_numbers<[1], [0], [0], [1], [0, 0, 1, 1], [], []>} : vector<64x32xbf16>, vector<32x128xbf16>, vector<64x128xf32> -> vector<64x128xf32>
    %c0_18 = arith.constant 0 : index
    %c0_19 = arith.constant 0 : index
    %24 = vector.load %arg7[%c0_18, %c0_19] : memref<32x128xbf16, #tpu.memory_space<vmem>>, vector<32x128xbf16>
    %cst_20 = arith.constant dense<0.000000e+00> : vector<64x128xf32>
    %25 = tpu.matmul %17, %24, %cst_20 {dimension_numbers = #tpu.dot_dimension_numbers<[1], [0], [0], [1], [0, 0, 1, 1], [], []>} : vector<64x32xbf16>, vector<32x128xbf16>, vector<64x128xf32> -> vector<64x128xf32>
    %26 = arith.addf %23, %25 : vector<64x128xf32>
    %c0_21 = arith.constant 0 : index
    %c0_22 = arith.constant 0 : index
    %27 = vector.load %arg8[%c0_21, %c0_22] : memref<1x128xf32, #tpu.memory_space<vmem>>, vector<1x128xf32>
    %28 = vector.broadcast %27 : vector<1x128xf32> to vector<64x128xf32>
    %29 = arith.addf %26, %28 : vector<64x128xf32>
    %c0_23 = arith.constant 0 : index
    %c0_24 = arith.constant 0 : index
    %30 = vector.load %arg9[%c0_23, %c0_24] : memref<64x128xf32, #tpu.memory_space<vmem>>, vector<64x128xf32>
    tpu.vector_store %arg9[%c0_23, %c0_24], %29 {strides = array<i32>} : memref<64x128xf32, #tpu.memory_space<vmem>>, vector<64x128xf32>,
    return
  }
}

</mosaic_0001>

<llo_original>
// kernel: fused_gnn.1
$region0: #{fused_gnn.1}
  #allocation0 [shape = 'u32[]', space=smem, size = 0x4, offset = 0x4, fixed_abs, tag = 'smem constant byte address 0x4 - core index']
  #allocation1 [shape = 'u32[144,128]{1,0:T(1,128)}', space=vmem, size = 0x12000, scoped, tag = 'internal scratch']
  %s0 = inlined_call_operand.vmem [shape: bf16[64,64], index: 0, kind: input, shape index: {}]
  %s1 = inlined_call_operand.vmem [shape: f32[64,1], index: 1, kind: input, shape index: {}]
  %s2 = inlined_call_operand.vmem [shape: bf16[64,16], index: 2, kind: input, shape index: {}]
  %s3 = inlined_call_operand.vmem [shape: bf16[16,32], index: 3, kind: input, shape index: {}]
  %s4 = inlined_call_operand.vmem [shape: bf16[16,32], index: 4, kind: input, shape index: {}]
  %s5 = inlined_call_operand.vmem [shape: f32[1,32], index: 5, kind: input, shape index: {}]
  %s6 = inlined_call_operand.vmem [shape: bf16[32,128], index: 6, kind: input, shape index: {}]
  %s7 = inlined_call_operand.vmem [shape: bf16[32,128], index: 7, kind: input, shape index: {}]
  %s8 = inlined_call_operand.vmem [shape: f32[1,128], index: 8, kind: input, shape index: {}]
  %s9 = inlined_call_operand.hbm [shape: f32[64,128], index: 9, kind: output, shape index: {}]
  %s10 = sld [smem:[#allocation0]]
  $region46: #{fused_gnn.1} parent=0
    _
  %s12 = ssub.s32 1, %s10
  %s13 = scalar_select 0, %s12, %s10
  $region1: #{fused_gnn.1} parent=0
    #allocation2 [shape = 'u8[32768]{0}', space=vmem, size = 0x8000, scoped, tag = 'output window, operand 0, single buffered']
    #allocation3 [shape = 's32[1]{0}', space=sflag, size = 0x4, scoped, tag = 'scoped memory for fused_gnn.1']
    %14 = vsyncpa [#allocation3], 0
    // Predicated region
    $region2: #{fused_gnn.1} parent=1 // pred_check
      _
    $region3: #{fused_gnn.1} parent=1 // pred_check_branch
      %16 = sbr.rel (0) target = $region5
    $region4: #{fused_gnn.1} parent=1 // pred_region
      _
    $region5: #{fused_gnn.1} parent=1 // pred_fallthru
      _
    // Predicated region
    $region6: #{fused_gnn.1} parent=1 // pred_check
      _
    $region7: #{fused_gnn.1} parent=1 // pred_check_branch
      %18 = sbr.rel (0) target = $region9
    $region8: #{fused_gnn.1} parent=1 // pred_region
      _
    $region9: #{fused_gnn.1} parent=1 // pred_fallthru
      _
    // Predicated region
    $region10: #{fused_gnn.1} parent=1 // pred_check
      _
    $region11: #{fused_gnn.1} parent=1 // pred_check_branch
      %20 = sbr.rel (0) target = $region13
    $region12: #{fused_gnn.1} parent=1 // pred_region
      _
    $region13: #{fused_gnn.1} parent=1 // pred_fallthru
      _
    // Predicated region
    $region14: #{fused_gnn.1} parent=1 // pred_check
      _
    $region15: #{fused_gnn.1} parent=1 // pred_check_branch
      %22 = sbr.rel (0) target = $region17
    $region16: #{fused_gnn.1} parent=1 // pred_region
      _
    $region17: #{fused_gnn.1} parent=1 // pred_fallthru
      _
    // Predicated region
    $region18: #{fused_gnn.1} parent=1 // pred_check
      _
    $region19: #{fused_gnn.1} parent=1 // pred_check_branch
      %24 = sbr.rel (0) target = $region21
    $region20: #{fused_gnn.1} parent=1 // pred_region
      _
    $region21: #{fused_gnn.1} parent=1 // pred_fallthru
      _
    // Predicated region
    $region22: #{fused_gnn.1} parent=1 // pred_check
      _
    $region23: #{fused_gnn.1} parent=1 // pred_check_branch
      %26 = sbr.rel (0) target = $region25
    $region24: #{fused_gnn.1} parent=1 // pred_region
      _
    $region25: #{fused_gnn.1} parent=1 // pred_fallthru
      _
    // Predicated region
    $region26: #{fused_gnn.1} parent=1 // pred_check
      _
    $region27: #{fused_gnn.1} parent=1 // pred_check_branch
      %28 = sbr.rel (0) target = $region29
    $region28: #{fused_gnn.1} parent=1 // pred_region
      _
    $region29: #{fused_gnn.1} parent=1 // pred_fallthru
      _
    // Predicated region
    $region30: #{fused_gnn.1} parent=1 // pred_check
      _
    $region31: #{fused_gnn.1} parent=1 // pred_check_branch
      %30 = sbr.rel (0) target = $region33
    $region32: #{fused_gnn.1} parent=1 // pred_region
      _
    $region33: #{fused_gnn.1} parent=1 // pred_fallthru
      _
    // Predicated region
    $region34: #{fused_gnn.1} parent=1 // pred_check
      _
    $region35: #{fused_gnn.1} parent=1 // pred_check_branch
      %32 = sbr.rel (0) target = $region37
    $region36: #{fused_gnn.1} parent=1 // pred_region
      _
    $region37: #{fused_gnn.1} parent=1 // pred_fallthru
      _
    %v34 = vld [vmem:[%s0] sm:$0xf]
    %v35 = vld [vmem:[%s0 + $0x4] sm:$0xf]
    %v36 = vld [vmem:[%s0 + $0x8] sm:$0xf]
    %v37 = vld [vmem:[%s0 + $0xc] sm:$0xf]
    %v38 = vld [vmem:[%s0 + $0x10] sm:$0xf]
    %v39 = vld [vmem:[%s0 + $0x14] sm:$0xf]
    %v40 = vld [vmem:[%s0 + $0x18] sm:$0xf]
    %v41 = vld [vmem:[%s0 + $0x1c] sm:$0xf]
    %v42 = vld [vmem:[%s1] sm:$0xff]
    %v43 = vld [vmem:[%s1 + $0x8] sm:$0xff]
    %v44 = vld [vmem:[%s1 + $0x10] sm:$0xff]
    %v45 = vld [vmem:[%s1 + $0x18] sm:$0xff]
    %v46 = vld [vmem:[%s1 + $0x20] sm:$0xff]
    %v47 = vld [vmem:[%s1 + $0x28] sm:$0xff]
    %v48 = vld [vmem:[%s1 + $0x30] sm:$0xff]
    %v49 = vld [vmem:[%s1 + $0x38] sm:$0xff]
    %v50 = vld [vmem:[%s2] sm:$0xf]
    %v51 = vld [vmem:[%s2 + $0x4] sm:$0xf]
    %v52 = vld [vmem:[%s2 + $0x8] sm:$0xf]
    %v53 = vld [vmem:[%s2 + $0xc] sm:$0xf]
    %v54 = vld [vmem:[%s2 + $0x10] sm:$0xf]
    %v55 = vld [vmem:[%s2 + $0x14] sm:$0xf]
    %v56 = vld [vmem:[%s2 + $0x18] sm:$0xf]
    %v57 = vld [vmem:[%s2 + $0x1c] sm:$0xf]
    %v66 = vunpack.c.l.b16 %v34
    %v67 = vunpack.c.l.b16 %v35
    %v68 = vunpack.c.l.b16 %v36
    %v69 = vunpack.c.l.b16 %v37
    %v70 = vunpack.c.l.b16 %v38
    %v71 = vunpack.c.l.b16 %v39
    %v72 = vunpack.c.l.b16 %v40
    %v73 = vunpack.c.l.b16 %v41
    %v74 = vpack.c.b16 %v67, %v66
    %v75 = vpack.c.b16 %v69, %v68
    %v76 = vpack.c.b16 %v71, %v70
    %v77 = vpack.c.b16 %v73, %v72
    %v86 = vunpack.c.l.b16 %v50
    %v87 = vunpack.c.l.b16 %v51
    %v88 = vunpack.c.l.b16 %v52
    %v89 = vunpack.c.l.b16 %v53
    %v90 = vunpack.c.l.b16 %v54
    %v91 = vunpack.c.l.b16 %v55
    %v92 = vunpack.c.l.b16 %v56
    %v93 = vunpack.c.l.b16 %v57
    %v94 = vpack.c.b16 %v87, %v86
    %v95 = vpack.c.b16 %v89, %v88
    %v96 = vpack.c.b16 %v91, %v90
    %v97 = vpack.c.b16 %v93, %v92
    %vm102 = vcmask 523264
    %v104 = vsel %vm102, %v74, 0
    %v107 = vsel %vm102, %v75, 0
    %v110 = vsel %vm102, %v76, 0
    %v113 = vsel %vm102, %v77, 0
    %115 = vmatprep.subr.bf16.mxu0 0
    %116 = vmatpush1.bf16.msra.mxu0 %v94
    %117 = vmatprep.subr.bf16.mxu0 0
    %118 = vmatpush1.bf16.msra.mxu0 %v95
    %119 = vmatprep.subr.bf16.mxu0 0
    %120 = vmatpush1.bf16.msra.mxu0 %v96
    %121 = vmatprep.subr.bf16.mxu0 0
    %122 = vmatpush1.bf16.msra.mxu0 %v97
    %123 = vmatprep.subr.bf16.mxu0 0
    %124 = vmatpush1.bf16.msra.mxu0 0
    %125 = vmatprep.subr.bf16.mxu0 0
    %126 = vmatpush1.bf16.msra.mxu0 0
    %127 = vmatprep.subr.bf16.mxu0 0
    %128 = vmatpush1.bf16.msra.mxu0 0
    %129 = vmatprep.subr.bf16.mxu0 0
    %130 = vmatpush1.bf16.msra.mxu0 0
    %131 = vmatprep.subr.bf16.mxu0 0
    %132 = vmatpush1.bf16.msra.mxu0 0
    %133 = vmatprep.subr.bf16.mxu0 0
    %134 = vmatpush1.bf16.msra.mxu0 0
    %135 = vmatprep.subr.bf16.mxu0 0
    %136 = vmatpush1.bf16.msra.mxu0 0
    %137 = vmatprep.subr.bf16.mxu0 0
    %138 = vmatpush1.bf16.msra.mxu0 0
    %139 = vmatprep.subr.bf16.mxu0 0
    %140 = vmatpush1.bf16.msra.mxu0 0
    %141 = vmatprep.subr.bf16.mxu0 0
    %142 = vmatpush1.bf16.msra.mxu0 0
    %143 = vmatprep.subr.bf16.mxu0 0
    %144 = vmatpush1.bf16.msra.mxu0 0
    %145 = vmatprep.subr.bf16.mxu0 0
    %146 = vmatpush1.bf16.msra.mxu0 0
    %147 = vmatprep.mubr.bf16.mxu0 0
    %148 = vmatmul.mubr.bf16.gmra.mrb[0].mxu0 %v104
    %v149 = vpop.f32.mrb[0].mxu0
    %v150 = vadd.f32 0.0, %v149
    %v151 = vpop.f32.mrb[0].mxu0
    %v152 = vpop.f32.mrb[0].mxu0
    %v153 = vadd.f32 0.0, %v152
    %v154 = vpop.f32.mrb[0].mxu0
    %155 = vmatprep.mubr.bf16.mxu0 0
    %156 = vmatmul.mubr.bf16.gmra.mrb[0].mxu0 %v107
    %v157 = vpop.f32.mrb[0].mxu0
    %v158 = vadd.f32 0.0, %v157
    %v159 = vpop.f32.mrb[0].mxu0
    %v160 = vpop.f32.mrb[0].mxu0
    %v161 = vadd.f32 0.0, %v160
    %v162 = vpop.f32.mrb[0].mxu0
    %163 = vmatprep.mubr.bf16.mxu0 0
    %164 = vmatmul.mubr.bf16.gmra.mrb[0].mxu0 %v110
    %v165 = vpop.f32.mrb[0].mxu0
    %v166 = vadd.f32 0.0, %v165
    %v167 = vpop.f32.mrb[0].mxu0
    %v168 = vpop.f32.mrb[0].mxu0
    %v169 = vadd.f32 0.0, %v168
    %v170 = vpop.f32.mrb[0].mxu0
    %171 = vmatprep.mubr.bf16.mxu0 0
    %172 = vmatmul.mubr.bf16.gmra.mrb[0].mxu0 %v113
    %v173 = vpop.f32.mrb[0].mxu0
    %v174 = vadd.f32 0.0, %v173
    %v175 = vpop.f32.mrb[0].mxu0
    %v176 = vpop.f32.mrb[0].mxu0
    %v177 = vadd.f32 0.0, %v176
    %v178 = vpop.f32.mrb[0].mxu0
    %179 = vdwg.mxu0
    %181 = vset.pattern.permute.xlu0 0
    %182 = vperm.xlu0 %181, %v42
    %v183 = vpop.permute.xlu0 %182
    %186 = vset.pattern.permute.xlu0 0
    %187 = vperm.xlu0 %186, %v43
    %v188 = vpop.permute.xlu0 %187
    %191 = vset.pattern.permute.xlu0 0
    %192 = vperm.xlu0 %191, %v44
    %v193 = vpop.permute.xlu0 %192
    %196 = vset.pattern.permute.xlu0 0
    %197 = vperm.xlu0 %196, %v45
    %v198 = vpop.permute.xlu0 %197
    %201 = vset.pattern.permute.xlu0 0
    %202 = vperm.xlu0 %201, %v46
    %v203 = vpop.permute.xlu0 %202
    %206 = vset.pattern.permute.xlu0 0
    %207 = vperm.xlu0 %206, %v47
    %v208 = vpop.permute.xlu0 %207
    %211 = vset.pattern.permute.xlu0 0
    %212 = vperm.xlu0 %211, %v48
    %v213 = vpop.permute.xlu0 %212
    %216 = vset.pattern.permute.xlu0 0
    %217 = vperm.xlu0 %216, %v49
    %v218 = vpop.permute.xlu0 %217
    %v220 = vmul.f32 %v150, %v183
    %v221 = vmul.f32 %v153, %v188
    %v222 = vmul.f32 %v158, %v193
    %v223 = vmul.f32 %v161, %v198
    %v224 = vmul.f32 %v166, %v203
    %v225 = vmul.f32 %v169, %v208
    %v226 = vmul.f32 %v174, %v213
    %v227 = vmul.f32 %v177, %v218
    %v228 = vpack.c.bf16 %v221, %v220
    %v229 = vpack.c.bf16 %v223, %v222
    %v230 = vpack.c.bf16 %v225, %v224
    %v231 = vpack.c.bf16 %v227, %v226
    %v232 = vld [vmem:[%s3] sm:$0xf]
    %v233 = vld [vmem:[%s3 + $0x4] sm:$0xf]
    %v234 = vld [vmem:[%s4] sm:$0xf]
    %v235 = vld [vmem:[%s4 + $0x4] sm:$0xf]
    %v238 = vunpack.c.l.b16 %v234
    %v239 = vunpack.c.l.b16 %v235
    %v240 = vpack.c.b16 %v239, %v238
    %vm242 = vcmask 130048
    %v244 = vsel %vm242, %v94, 0
    %v247 = vsel %vm242, %v95, 0
    %v250 = vsel %vm242, %v96, 0
    %v253 = vsel %vm242, %v97, 0
    %255 = vmatprep.subr.bf16.mxu0 0
    %256 = vmatpush1.bf16.msra.mxu0 %v240
    %257 = vmatprep.subr.bf16.mxu0 0
    %258 = vmatpush1.bf16.msra.mxu0 0
    %259 = vmatprep.subr.bf16.mxu0 0
    %260 = vmatpush1.bf16.msra.mxu0 0
    %261 = vmatprep.subr.bf16.mxu0 0
    %262 = vmatpush1.bf16.msra.mxu0 0
    %263 = vmatprep.subr.bf16.mxu0 0
    %264 = vmatpush1.bf16.msra.mxu0 0
    %265 = vmatprep.subr.bf16.mxu0 0
    %266 = vmatpush1.bf16.msra.mxu0 0
    %267 = vmatprep.subr.bf16.mxu0 0
    %268 = vmatpush1.bf16.msra.mxu0 0
    %269 = vmatprep.subr.bf16.mxu0 0
    %270 = vmatpush1.bf16.msra.mxu0 0
    %271 = vmatprep.subr.bf16.mxu0 0
    %272 = vmatpush1.bf16.msra.mxu0 0
    %273 = vmatprep.subr.bf16.mxu0 0
    %274 = vmatpush1.bf16.msra.mxu0 0
    %275 = vmatprep.subr.bf16.mxu0 0
    %276 = vmatpush1.bf16.msra.mxu0 0
    %277 = vmatprep.subr.bf16.mxu0 0
    %278 = vmatpush1.bf16.msra.mxu0 0
    %279 = vmatprep.subr.bf16.mxu0 0
    %280 = vmatpush1.bf16.msra.mxu0 0
    %281 = vmatprep.subr.bf16.mxu0 0
    %282 = vmatpush1.bf16.msra.mxu0 0
    %283 = vmatprep.subr.bf16.mxu0 0
    %284 = vmatpush1.bf16.msra.mxu0 0
    %285 = vmatprep.subr.bf16.mxu0 0
    %286 = vmatpush1.bf16.msra.mxu0 0
    %287 = vmatprep.mubr.bf16.mxu0 0
    %288 = vmatmul.mubr.bf16.gmra.mrb[0].mxu0 %v244
    %v289 = vpop.f32.mrb[0].mxu0
    %v290 = vadd.f32 0.0, %v289
    %v291 = vpop.f32.mrb[0].mxu0
    %v292 = vpop.f32.mrb[0].mxu0
    %v293 = vadd.f32 0.0, %v292
    %v294 = vpop.f32.mrb[0].mxu0
    %295 = vmatprep.mubr.bf16.mxu0 0
    %296 = vmatmul.mubr.bf16.gmra.mrb[0].mxu0 %v247
    %v297 = vpop.f32.mrb[0].mxu0
    %v298 = vadd.f32 0.0, %v297
    %v299 = vpop.f32.mrb[0].mxu0
    %v300 = vpop.f32.mrb[0].mxu0
    %v301 = vadd.f32 0.0, %v300
    %v302 = vpop.f32.mrb[0].mxu0
    %303 = vmatprep.mubr.bf16.mxu0 0
    %304 = vmatmul.mubr.bf16.gmra.mrb[0].mxu0 %v250
    %v305 = vpop.f32.mrb[0].mxu0
    %v306 = vadd.f32 0.0, %v305
    %v307 = vpop.f32.mrb[0].mxu0
    %v308 = vpop.f32.mrb[0].mxu0
    %v309 = vadd.f32 0.0, %v308
    %v310 = vpop.f32.mrb[0].mxu0
    %311 = vmatprep.mubr.bf16.mxu0 0
    %312 = vmatmul.mubr.bf16.gmra.mrb[0].mxu0 %v253
    %v313 = vpop.f32.mrb[0].mxu0
    %v314 = vadd.f32 0.0, %v313
    %v315 = vpop.f32.mrb[0].mxu0
    %v316 = vpop.f32.mrb[0].mxu0
    %v317 = vadd.f32 0.0, %v316
    %v318 = vpop.f32.mrb[0].mxu0
    %319 = vdwg.mxu0
    %v322 = vunpack.c.l.b16 %v232
    %v323 = vunpack.c.l.b16 %v233
    %v324 = vpack.c.b16 %v323, %v322
    %v327 = vsel %vm242, %v228, 0
    %v330 = vsel %vm242, %v229, 0
    %v333 = vsel %vm242, %v230, 0
    %v336 = vsel %vm242, %v231, 0
    %338 = vmatprep.subr.bf16.mxu0 0
    %339 = vmatpush1.bf16.msra.mxu0 %v324
    %340 = vmatprep.subr.bf16.mxu0 0
    %341 = vmatpush1.bf16.msra.mxu0 0
    %342 = vmatprep.subr.bf16.mxu0 0
    %343 = vmatpush1.bf16.msra.mxu0 0
    %344 = vmatprep.subr.bf16.mxu0 0
    %345 = vmatpush1.bf16.msra.mxu0 0
    %346 = vmatprep.subr.bf16.mxu0 0
    %347 = vmatpush1.bf16.msra.mxu0 0
    %348 = vmatprep.subr.bf16.mxu0 0
    %349 = vmatpush1.bf16.msra.mxu0 0
    %350 = vmatprep.subr.bf16.mxu0 0
    %351 = vmatpush1.bf16.msra.mxu0 0
    %352 = vmatprep.subr.bf16.mxu0 0
    %353 = vmatpush1.bf16.msra.mxu0 0
    %354 = vmatprep.subr.bf16.mxu0 0
    %355 = vmatpush1.bf16.msra.mxu0 0
    %356 = vmatprep.subr.bf16.mxu0 0
    %357 = vmatpush1.bf16.msra.mxu0 0
    %358 = vmatprep.subr.bf16.mxu0 0
    %359 = vmatpush1.bf16.msra.mxu0 0
    %360 = vmatprep.subr.bf16.mxu0 0
    %361 = vmatpush1.bf16.msra.mxu0 0
    %362 = vmatprep.subr.bf16.mxu0 0
    %363 = vmatpush1.bf16.msra.mxu0 0
    %364 = vmatprep.subr.bf16.mxu0 0
    %365 = vmatpush1.bf16.msra.mxu0 0
    %366 = vmatprep.subr.bf16.mxu0 0
    %367 = vmatpush1.bf16.msra.mxu0 0
    %368 = vmatprep.subr.bf16.mxu0 0
    %369 = vmatpush1.bf16.msra.mxu0 0
    %370 = vmatprep.mubr.bf16.mxu0 0
    %371 = vmatmul.mubr.bf16.gmra.mrb[0].mxu0 %v327
    %v372 = vpop.f32.mrb[0].mxu0
    %v373 = vadd.f32 %v290, %v372
    %v374 = vpop.f32.mrb[0].mxu0
    %v375 = vpop.f32.mrb[0].mxu0
    %v376 = vadd.f32 %v293, %v375
    %v377 = vpop.f32.mrb[0].mxu0
    %378 = vmatprep.mubr.bf16.mxu0 0
    %379 = vmatmul.mubr.bf16.gmra.mrb[0].mxu0 %v330
    %v380 = vpop.f32.mrb[0].mxu0
    %v381 = vadd.f32 %v298, %v380
    %v382 = vpop.f32.mrb[0].mxu0
    %v383 = vpop.f32.mrb[0].mxu0
    %v384 = vadd.f32 %v301, %v383
    %v385 = vpop.f32.mrb[0].mxu0
    %386 = vmatprep.mubr.bf16.mxu0 0
    %387 = vmatmul.mubr.bf16.gmra.mrb[0].mxu0 %v333
    %v388 = vpop.f32.mrb[0].mxu0
    %v389 = vadd.f32 %v306, %v388
    %v390 = vpop.f32.mrb[0].mxu0
    %v391 = vpop.f32.mrb[0].mxu0
    %v392 = vadd.f32 %v309, %v391
    %v393 = vpop.f32.mrb[0].mxu0
    %394 = vmatprep.mubr.bf16.mxu0 0
    %395 = vmatmul.mubr.bf16.gmra.mrb[0].mxu0 %v336
    %v396 = vpop.f32.mrb[0].mxu0
    %v397 = vadd.f32 %v314, %v396
    %v398 = vpop.f32.mrb[0].mxu0
    %v399 = vpop.f32.mrb[0].mxu0
    %v400 = vadd.f32 %v317, %v399
    %v401 = vpop.f32.mrb[0].mxu0
    %402 = vdwg.mxu0
    %v403 = vld [vmem:[%s5] sm:$0x1]
    %v405 = vlaneseq
    %v406 = vshrl.u32 %v405, 7
    %v407 = vsub.s32 0, %v406
    %v408 = vrot.slane %v403, %v407
    %v410 = vadd.f32 %v373, %v408
    %v411 = vadd.f32 %v376, %v408
    %v412 = vadd.f32 %v381, %v408
    %v413 = vadd.f32 %v384, %v408
    %v414 = vadd.f32 %v389, %v408
    %v415 = vadd.f32 %v392, %v408
    %v416 = vadd.f32 %v397, %v408
    %v417 = vadd.f32 %v400, %v408
    %v418 = vmax.f32 %v410, 0.0
    %v419 = vmax.f32 %v411, 0.0
    %v420 = vmax.f32 %v412, 0.0
    %v421 = vmax.f32 %v413, 0.0
    %v422 = vmax.f32 %v414, 0.0
    %v423 = vmax.f32 %v415, 0.0
    %v424 = vmax.f32 %v416, 0.0
    %v425 = vmax.f32 %v417, 0.0
    %v426 = vpack.c.bf16 %v419, %v418
    %v427 = vpack.c.bf16 %v421, %v420
    %v428 = vpack.c.bf16 %v423, %v422
    %v429 = vpack.c.bf16 %v425, %v424
    %430 = vmatprep.subr.bf16.mxu0 0
    %431 = vmatpush1.bf16.msra.mxu0 %v426
    %432 = vmatprep.subr.bf16.mxu0 0
    %433 = vmatpush1.bf16.msra.mxu0 %v427
    %434 = vmatprep.subr.bf16.mxu0 0
    %435 = vmatpush1.bf16.msra.mxu0 %v428
    %436 = vmatprep.subr.bf16.mxu0 0
    %437 = vmatpush1.bf16.msra.mxu0 %v429
    %438 = vmatprep.subr.bf16.mxu0 0
    %439 = vmatpush1.bf16.msra.mxu0 0
    %440 = vmatprep.subr.bf16.mxu0 0
    %441 = vmatpush1.bf16.msra.mxu0 0
    %442 = vmatprep.subr.bf16.mxu0 0
    %443 = vmatpush1.bf16.msra.mxu0 0
    %444 = vmatprep.subr.bf16.mxu0 0
    %445 = vmatpush1.bf16.msra.mxu0 0
    %446 = vmatprep.subr.bf16.mxu0 0
    %447 = vmatpush1.bf16.msra.mxu0 0
    %448 = vmatprep.subr.bf16.mxu0 0
    %449 = vmatpush1.bf16.msra.mxu0 0
    %450 = vmatprep.subr.bf16.mxu0 0
    %451 = vmatpush1.bf16.msra.mxu0 0
    %452 = vmatprep.subr.bf16.mxu0 0
    %453 = vmatpush1.bf16.msra.mxu0 0
    %454 = vmatprep.subr.bf16.mxu0 0
    %455 = vmatpush1.bf16.msra.mxu0 0
    %456 = vmatprep.subr.bf16.mxu0 0
    %457 = vmatpush1.bf16.msra.mxu0 0
    %458 = vmatprep.subr.bf16.mxu0 0
    %459 = vmatpush1.bf16.msra.mxu0 0
    %460 = vmatprep.subr.bf16.mxu0 0
    %461 = vmatpush1.bf16.msra.mxu0 0
    %462 = vmatprep.mubr.bf16.mxu0 0
    %463 = vmatmul.mubr.bf16.gmra.mrb[0].mxu0 %v104
    %v464 = vpop.f32.mrb[0].mxu0
    %v465 = vadd.f32 0.0, %v464
    %v466 = vpop.f32.mrb[0].mxu0
    %v467 = vpop.f32.mrb[0].mxu0
    %v468 = vadd.f32 0.0, %v467
    %v469 = vpop.f32.mrb[0].mxu0
    %470 = vmatprep.mubr.bf16.mxu0 0
    %471 = vmatmul.mubr.bf16.gmra.mrb[0].mxu0 %v107
    %v472 = vpop.f32.mrb[0].mxu0
    %v473 = vadd.f32 0.0, %v472
    %v474 = vpop.f32.mrb[0].mxu0
    %v475 = vpop.f32.mrb[0].mxu0
    %v476 = vadd.f32 0.0, %v475
    %v477 = vpop.f32.mrb[0].mxu0
    %478 = vmatprep.mubr.bf16.mxu0 0
    %479 = vmatmul.mubr.bf16.gmra.mrb[0].mxu0 %v110
    %v480 = vpop.f32.mrb[0].mxu0
    %v481 = vadd.f32 0.0, %v480
    %v482 = vpop.f32.mrb[0].mxu0
    %v483 = vpop.f32.mrb[0].mxu0
    %v484 = vadd.f32 0.0, %v483
    %v485 = vpop.f32.mrb[0].mxu0
    %486 = vmatprep.mubr.bf16.mxu0 0
    %487 = vmatmul.mubr.bf16.gmra.mrb[0].mxu0 %v113
    %v488 = vpop.f32.mrb[0].mxu0
    %v489 = vadd.f32 0.0, %v488
    %v490 = vpop.f32.mrb[0].mxu0
    %v491 = vpop.f32.mrb[0].mxu0
    %v492 = vadd.f32 0.0, %v491
    %v493 = vpop.f32.mrb[0].mxu0
    %494 = vdwg.mxu0
    %v495 = vmul.f32 %v465, %v183
    %v496 = vmul.f32 %v468, %v188
    %v497 = vmul.f32 %v473, %v193
    %v498 = vmul.f32 %v476, %v198
    %v499 = vmul.f32 %v481, %v203
    %v500 = vmul.f32 %v484, %v208
    %v501 = vmul.f32 %v489, %v213
    %v502 = vmul.f32 %v492, %v218
    %v503 = vpack.c.bf16 %v496, %v495
    %v504 = vpack.c.bf16 %v498, %v497
    %v505 = vpack.c.bf16 %v500, %v499
    %v506 = vpack.c.bf16 %v502, %v501
    %v507 = vld [vmem:[%s6] sm:$0xf]
    %v508 = vld [vmem:[%s6 + $0x4] sm:$0xf]
    %v509 = vld [vmem:[%s6 + $0x8] sm:$0xf]
    %v510 = vld [vmem:[%s6 + $0xc] sm:$0xf]
    %v511 = vld [vmem:[%s7] sm:$0xf]
    %v512 = vld [vmem:[%s7 + $0x4] sm:$0xf]
    %v513 = vld [vmem:[%s7 + $0x8] sm:$0xf]
    %v514 = vld [vmem:[%s7 + $0xc] sm:$0xf]
    %v519 = vunpack.c.l.b16 %v511
    %v520 = vunpack.c.l.b16 %v512
    %v521 = vunpack.c.l.b16 %v513
    %v522 = vunpack.c.l.b16 %v514
    %v523 = vpack.c.b16 %v520, %v519
    %v524 = vpack.c.b16 %v522, %v521
    %vm527 = vcmask 261120
    %v529 = vsel %vm527, %v426, 0
    %v532 = vsel %vm527, %v427, 0
    %v535 = vsel %vm527, %v428, 0
    %v538 = vsel %vm527, %v429, 0
    %540 = vmatprep.subr.bf16.mxu0 0
    %541 = vmatpush1.bf16.msra.mxu0 %v523
    %542 = vmatprep.subr.bf16.mxu0 0
    %543 = vmatpush1.bf16.msra.mxu0 %v524
    %544 = vmatprep.subr.bf16.mxu0 0
    %545 = vmatpush1.bf16.msra.mxu0 0
    %546 = vmatprep.subr.bf16.mxu0 0
    %547 = vmatpush1.bf16.msra.mxu0 0
    %548 = vmatprep.subr.bf16.mxu0 0
    %549 = vmatpush1.bf16.msra.mxu0 0
    %550 = vmatprep.subr.bf16.mxu0 0
    %551 = vmatpush1.bf16.msra.mxu0 0
    %552 = vmatprep.subr.bf16.mxu0 0
    %553 = vmatpush1.bf16.msra.mxu0 0
    %554 = vmatprep.subr.bf16.mxu0 0
    %555 = vmatpush1.bf16.msra.mxu0 0
    %556 = vmatprep.subr.bf16.mxu0 0
    %557 = vmatpush1.bf16.msra.mxu0 0
    %558 = vmatprep.subr.bf16.mxu0 0
    %559 = vmatpush1.bf16.msra.mxu0 0
    %560 = vmatprep.subr.bf16.mxu0 0
    %561 = vmatpush1.bf16.msra.mxu0 0
    %562 = vmatprep.subr.bf16.mxu0 0
    %563 = vmatpush1.bf16.msra.mxu0 0
    %564 = vmatprep.subr.bf16.mxu0 0
    %565 = vmatpush1.bf16.msra.mxu0 0
    %566 = vmatprep.subr.bf16.mxu0 0
    %567 = vmatpush1.bf16.msra.mxu0 0
    %568 = vmatprep.subr.bf16.mxu0 0
    %569 = vmatpush1.bf16.msra.mxu0 0
    %570 = vmatprep.subr.bf16.mxu0 0
    %571 = vmatpush1.bf16.msra.mxu0 0
    %572 = vmatprep.mubr.bf16.mxu0 0
    %573 = vmatmul.mubr.bf16.gmra.mrb[0].mxu0 %v529
    %v574 = vpop.f32.mrb[0].mxu0
    %v575 = vadd.f32 0.0, %v574
    %v576 = vpop.f32.mrb[0].mxu0
    %v577 = vpop.f32.mrb[0].mxu0
    %v578 = vadd.f32 0.0, %v577
    %v579 = vpop.f32.mrb[0].mxu0
    %580 = vmatprep.mubr.bf16.mxu0 0
    %581 = vmatmul.mubr.bf16.gmra.mrb[0].mxu0 %v532
    %v582 = vpop.f32.mrb[0].mxu0
    %v583 = vadd.f32 0.0, %v582
    %v584 = vpop.f32.mrb[0].mxu0
    %v585 = vpop.f32.mrb[0].mxu0
    %v586 = vadd.f32 0.0, %v585
    %v587 = vpop.f32.mrb[0].mxu0
    %588 = vmatprep.mubr.bf16.mxu0 0
    %589 = vmatmul.mubr.bf16.gmra.mrb[0].mxu0 %v535
    %v590 = vpop.f32.mrb[0].mxu0
    %v591 = vadd.f32 0.0, %v590
    %v592 = vpop.f32.mrb[0].mxu0
    %v593 = vpop.f32.mrb[0].mxu0
    %v594 = vadd.f32 0.0, %v593
    %v595 = vpop.f32.mrb[0].mxu0
    %596 = vmatprep.mubr.bf16.mxu0 0
    %597 = vmatmul.mubr.bf16.gmra.mrb[0].mxu0 %v538
    %v598 = vpop.f32.mrb[0].mxu0
    %v599 = vadd.f32 0.0, %v598
    %v600 = vpop.f32.mrb[0].mxu0
    %v601 = vpop.f32.mrb[0].mxu0
    %v602 = vadd.f32 0.0, %v601
    %v603 = vpop.f32.mrb[0].mxu0
    %604 = vdwg.mxu0
    %v609 = vunpack.c.l.b16 %v507
    %v610 = vunpack.c.l.b16 %v508
    %v611 = vunpack.c.l.b16 %v509
    %v612 = vunpack.c.l.b16 %v510
    %v613 = vpack.c.b16 %v610, %v609
    %v614 = vpack.c.b16 %v612, %v611
    %v618 = vsel %vm527, %v503, 0
    %v621 = vsel %vm527, %v504, 0
    %v624 = vsel %vm527, %v505, 0
    %v627 = vsel %vm527, %v506, 0
    %629 = vmatprep.subr.bf16.mxu0 0
    %630 = vmatpush1.bf16.msra.mxu0 %v613
    %631 = vmatprep.subr.bf16.mxu0 0
    %632 = vmatpush1.bf16.msra.mxu0 %v614
    %633 = vmatprep.subr.bf16.mxu0 0
    %634 = vmatpush1.bf16.msra.mxu0 0
    %635 = vmatprep.subr.bf16.mxu0 0
    %636 = vmatpush1.bf16.msra.mxu0 0
    %637 = vmatprep.subr.bf16.mxu0 0
    %638 = vmatpush1.bf16.msra.mxu0 0
    %639 = vmatprep.subr.bf16.mxu0 0
    %640 = vmatpush1.bf16.msra.mxu0 0
    %641 = vmatprep.subr.bf16.mxu0 0
    %642 = vmatpush1.bf16.msra.mxu0 0
    %643 = vmatprep.subr.bf16.mxu0 0
    %644 = vmatpush1.bf16.msra.mxu0 0
    %645 = vmatprep.subr.bf16.mxu0 0
    %646 = vmatpush1.bf16.msra.mxu0 0
    %647 = vmatprep.subr.bf16.mxu0 0
    %648 = vmatpush1.bf16.msra.mxu0 0
    %649 = vmatprep.subr.bf16.mxu0 0
    %650 = vmatpush1.bf16.msra.mxu0 0
    %651 = vmatprep.subr.bf16.mxu0 0
    %652 = vmatpush1.bf16.msra.mxu0 0
    %653 = vmatprep.subr.bf16.mxu0 0
    %654 = vmatpush1.bf16.msra.mxu0 0
    %655 = vmatprep.subr.bf16.mxu0 0
    %656 = vmatpush1.bf16.msra.mxu0 0
    %657 = vmatprep.subr.bf16.mxu0 0
    %658 = vmatpush1.bf16.msra.mxu0 0
    %659 = vmatprep.subr.bf16.mxu0 0
    %660 = vmatpush1.bf16.msra.mxu0 0
    %661 = vmatprep.mubr.bf16.mxu0 0
    %662 = vmatmul.mubr.bf16.gmra.mrb[0].mxu0 %v618
    %v663 = vpop.f32.mrb[0].mxu0
    %v664 = vadd.f32 %v575, %v663
    %v665 = vpop.f32.mrb[0].mxu0
    %v666 = vpop.f32.mrb[0].mxu0
    %v667 = vadd.f32 %v578, %v666
    %v668 = vpop.f32.mrb[0].mxu0
    %669 = vmatprep.mubr.bf16.mxu0 0
    %670 = vmatmul.mubr.bf16.gmra.mrb[0].mxu0 %v621
    %v671 = vpop.f32.mrb[0].mxu0
    %v672 = vadd.f32 %v583, %v671
    %v673 = vpop.f32.mrb[0].mxu0
    %v674 = vpop.f32.mrb[0].mxu0
    %v675 = vadd.f32 %v586, %v674
    %v676 = vpop.f32.mrb[0].mxu0
    %677 = vmatprep.mubr.bf16.mxu0 0
    %678 = vmatmul.mubr.bf16.gmra.mrb[0].mxu0 %v624
    %v679 = vpop.f32.mrb[0].mxu0
    %v680 = vadd.f32 %v591, %v679
    %v681 = vpop.f32.mrb[0].mxu0
    %v682 = vpop.f32.mrb[0].mxu0
    %v683 = vadd.f32 %v594, %v682
    %v684 = vpop.f32.mrb[0].mxu0
    %685 = vmatprep.mubr.bf16.mxu0 0
    %686 = vmatmul.mubr.bf16.gmra.mrb[0].mxu0 %v627
    %v687 = vpop.f32.mrb[0].mxu0
    %v688 = vadd.f32 %v599, %v687
    %v689 = vpop.f32.mrb[0].mxu0
    %v690 = vpop.f32.mrb[0].mxu0
    %v691 = vadd.f32 %v602, %v690
    %v692 = vpop.f32.mrb[0].mxu0
    %693 = vdwg.mxu0
    %v694 = vld [vmem:[%s8] sm:$0x1]
    %v696 = vlaneseq
    %v697 = vshrl.u32 %v696, 7
    %v698 = vsub.s32 0, %v697
    %v699 = vrot.slane %v694, %v698
    %v701 = vadd.f32 %v664, %v699
    %v702 = vadd.f32 %v667, %v699
    %v703 = vadd.f32 %v672, %v699
    %v704 = vadd.f32 %v675, %v699
    %v705 = vadd.f32 %v680, %v699
    %v706 = vadd.f32 %v683, %v699
    %v707 = vadd.f32 %v688, %v699
    %v708 = vadd.f32 %v691, %v699
    %709 = vst [vmem:[#allocation2] sm:$0xff] %v701
    %710 = vst [vmem:[#allocation2 + $0x8] sm:$0xff] %v702
    %711 = vst [vmem:[#allocation2 + $0x10] sm:$0xff] %v703
    %712 = vst [vmem:[#allocation2 + $0x18] sm:$0xff] %v704
    %713 = vst [vmem:[#allocation2 + $0x20] sm:$0xff] %v705
    %714 = vst [vmem:[#allocation2 + $0x28] sm:$0xff] %v706
    %715 = vst [vmem:[#allocation2 + $0x30] sm:$0xff] %v707
    %716 = vst [vmem:[#allocation2 + $0x38] sm:$0xff] %v708
    // Predicated region
    $region38: #{fused_gnn.1} parent=1 // pred_check
      _
    $region39: #{fused_gnn.1} parent=1 // pred_check_branch
      %718 = sbr.rel (0) target = $region41
    $region40: #{fused_gnn.1} parent=1 // pred_region
      %s720 = ssub.s32 1024, 1024
      %721 = vsyncadd [#allocation3], %s720
      %s722 = sshll.u32 [#allocation2], 4
      %s723 = int_to_ptr.vmem [resolvable:$true] %s722
      %728 = dma.vmem_to_hbm [thread:$0]  %s723, 1024, %s9, [#allocation3], 128, 128, 8
    $region41: #{fused_gnn.1} parent=1 // pred_fallthru
      _
    // Predicated region
    $region42: #{fused_gnn.1} parent=1 // pred_check
      _
    $region43: #{fused_gnn.1} parent=1 // pred_check_branch
      %730 = sbr.rel (0) target = $region45
    $region44: #{fused_gnn.1} parent=1 // pred_region
      %731 = dma.done [#allocation3], 1024
    $region45: #{fused_gnn.1} parent=1 // pred_fallthru
      _
    %732 = vsyncpa [#allocation3], 1

</llo_original>
